<compile_context>
chip_gen: v7x
topology: tpu7x:2x2x1
jax: 0.10.0
libtpu: 0.0.40
codegen_flags: <defaults>
</compile_context>

<pallas_src>
import functools

import jax
import jax.numpy as jnp
from jax import lax
from jax.experimental import pallas as pl
from jax.experimental.pallas import tpu as pltpu


def _kth_largest(d, w, axis):
    """w-th largest value of `d` along `axis` (keepdims=True).

    Iteratively knocks out the current max (w-1 times) then takes the max of what is left.
    Exact for distinct values (same tie caveat as the reference top-k membership); O(w*L)
    instead of the previous O(L^2) rank tensor.
    """
    def body(_, work):
        cur = jnp.max(work, axis=axis, keepdims=True)
        return jnp.where(work >= cur, -jnp.inf, work)

    work = lax.fori_loop(0, w - 1, body, d)
    return jnp.max(work, axis=axis, keepdims=True)


def _l2norm(x):
    # F.normalize(x, 2, dim=-1): x / max(||x||, 1e-12)
    n = jnp.sqrt(jnp.sum(x * x, axis=-1, keepdims=True))
    return x / jnp.maximum(n, 1e-12)


def _kmeans_mask_kernel(q_ref, k_ref, means_ref, out_ref, qc_ref, kc_ref, *,
                        t, kv_t, nc, wsz, kv_wsz, tq):
    qt = pl.program_id(2)

    # ---------- phase 1: per-(b,h) cluster assignments, cached in scratch across q tiles ----------
    @pl.when(qt == 0)
    def _():
        q = q_ref[0, 0, :, :]          # (t, d)
        k = k_ref[0, 0, :, :]          # (kv_t, d)
        means = means_ref[0, :, :]     # (nc, d)

        qn = _l2norm(q)
        kn = _l2norm(k)

        # Similarity. q scores kept token-major (t, nc) so the per-token cluster id comes out as a
        # COLUMN (no transpose needed when building (tq, t) mask tiles); k scores kept cluster-major
        # (nc, kv_t) so kc comes out as a ROW.
        dq = lax.dot_general(qn, means, (((1,), (1,)), ((), ())),
                             preferred_element_type=jnp.float32)   # (t, nc)
        dk = lax.dot_general(means, kn, (((1,), (1,)), ((), ())),
                             preferred_element_type=jnp.float32)   # (nc, kv_t)

        # top-w membership per cluster via the w-th-largest threshold.
        thr_q = _kth_largest(dq, wsz, axis=0)       # (1, nc)
        thr_k = _kth_largest(dk, kv_wsz, axis=1)    # (nc, 1)
        mem_q = dq >= thr_q                          # (t, nc)
        mem_k = dk >= thr_k                          # (nc, kv_t)

        # First (lowest-index) cluster that selected each token; sentinel `nc` == "no cluster"
        # (matches torch argmax-first-occurrence + masked_fill(-1) semantics).
        cq = lax.broadcasted_iota(jnp.int32, (t, nc), 1)
        qc_ref[...] = jnp.min(jnp.where(mem_q, cq, nc), axis=1, keepdims=True)   # (t, 1)

        ck = lax.broadcasted_iota(jnp.int32, (nc, kv_t), 0)
        kc_kv = jnp.min(jnp.where(mem_k, ck, nc), axis=0, keepdims=True)          # (1, kv_t)

        # torch compares kv cluster ids against arange(t): truncate, or pad with the null sentinel.
        if kv_t >= t:
            kc_ref[...] = kc_kv[:, :t]
        else:
            kc_ref[...] = jnp.full((1, t), nc, jnp.int32)
            kc_ref[:, :kv_t] = kc_kv

    # ---------- phase 2: one (tq, t) mask tile as a pure VPU broadcast compare ----------
    row0 = pl.multiple_of(qt * tq, tq)
    qc = qc_ref[pl.ds(row0, tq), :]    # (tq, 1) column
    kc = kc_ref[...]                   # (1, t)  row
    match = (qc == kc) & (qc != nc) & (kc != nc)
    out_ref[0, 0, :, :] = match.astype(jnp.int8)


def _pick_tq(t):
    for cand in (512, 256, 128, 64, 32, 16, 8):
        if t % cand == 0:
            return min(cand, t)
    return t


def kmeans_attention_mask(q, k, means, window_size, num_clusters):
    """Pallas implementation of KmeansAttention.forward (update_kmeans=False)."""
    b, h, t, d = q.shape
    kv_t = k.shape[2]
    wsz = min(window_size, t)
    kv_wsz = min(window_size, kv_t)
    tq = _pick_tq(t)
    n_qt = t // tq

    kernel = functools.partial(
        _kmeans_mask_kernel,
        t=t, kv_t=kv_t, nc=num_clusters, wsz=wsz, kv_wsz=kv_wsz, tq=tq)

    out = pl.pallas_call(
        kernel,
        out_shape=jax.ShapeDtypeStruct((b, h, t, t), jnp.int8),
        grid=(b, h, n_qt),
        in_specs=[
            pl.BlockSpec((1, 1, t, d), lambda bi, hi, qi: (bi, hi, 0, 0)),
            pl.BlockSpec((1, 1, kv_t, d), lambda bi, hi, qi: (bi, hi, 0, 0)),
            pl.BlockSpec((1, num_clusters, d), lambda bi, hi, qi: (hi, 0, 0)),
        ],
        out_specs=pl.BlockSpec((1, 1, tq, t), lambda bi, hi, qi: (bi, hi, qi, 0)),
        scratch_shapes=[
            pltpu.VMEM((t, 1), jnp.int32),   # qc: per-query-token cluster id (column)
            pltpu.VMEM((1, t), jnp.int32),   # kc: per-key-token cluster id (row, padded to t)
        ],
        compiler_params=pltpu.CompilerParams(
            dimension_semantics=("parallel", "parallel", "arbitrary")),
    )(q, k, means)
    # TODO(synk): emit bool directly from the kernel once i1 outputs are unconditionally supported;
    # the int8 mask already cuts writeback 4x and the remaining cast is a 1-byte copy pass.
    return out.astype(jnp.bool_)


def ref_forward(q, k, means, window_size, num_clusters):
    """Pure-JAX reference that mirrors the PyTorch forward step-by-step."""
    b, h, t, d = q.shape
    kv_t = k.shape[2]
    wsz = min(window_size, t)
    kv_wsz = min(window_size, kv_t)

    x = jnp.concatenate([q, k], axis=2)
    xn = x / jnp.maximum(jnp.sqrt(jnp.sum(x * x, axis=-1, keepdims=True)), 1e-12)
    dists = jnp.einsum('bhld,hcd->bhlc', xn, means)
    q_dists, k_dists = dists[:, :, :t], dists[:, :, t:]

    def distribution(dd, w):
        dt = jnp.swapaxes(dd, -1, -2)            # (b,h,nc,L)
        _, idx = lax.top_k(dt, w)                # (b,h,nc,w)
        return idx

    qi = distribution(q_dists, wsz)              # (b,h,nc,wsz)
    ki = distribution(k_dists, kv_wsz)           # (b,h,nc,kv_wsz)
    ar = jnp.arange(t)

    qm = (qi[..., None] == ar).sum(-2)           # (b,h,nc,t)
    qm = jnp.swapaxes(qm, -1, -2)                # (b,h,t,nc)
    qc = jnp.argmax(qm, -1)
    qc = jnp.where(jnp.all(qm == 0, -1), -1, qc)

    km = (ki[..., None] == ar).sum(-2)
    km = jnp.swapaxes(km, -1, -2)
    kc = jnp.argmax(km, -1)
    kc = jnp.where(jnp.all(km == 0, -1), -1, kc)

    matches = qc[..., :, None] == kc[..., None, :]
    mmnull = (qc[..., :, None] == -1) | (kc[..., None, :] == -1)
    return matches & ~mmnull


if __name__ == "__main__":
    key = jax.random.PRNGKey(0)
    b, h, t, kv_t, d = 2, 2, 64, 64, 32
    num_clusters, window_size = 4, 16

    kq, kk, km_key = jax.random.split(key, 3)
    q = jax.random.normal(kq, (b, h, t, d), jnp.float32)
    k = jax.random.normal(kk, (b, h, kv_t, d), jnp.float32)
    # Kmeans buffer: torch.randn(num_heads, num_clusters, head_dim); assumed loaded (initted=True)
    means = jax.random.normal(km_key, (h, num_clusters, d), jnp.float32)

    mask = kmeans_attention_mask(q, k, means, window_size, num_clusters)
    mask = jax.block_until_ready(mask)

    ref = ref_forward(q, k, means, window_size, num_clusters)
    assert mask.shape == (b, h, t, t)
    assert mask.dtype == jnp.bool_
    assert bool(jnp.array_equal(mask, ref)), "Pallas mask mismatch vs reference"

    print("KERNEL_OK")
</pallas_src>

<mosaic_0001>
module attributes {stable_mosaic.version = 11 : i64} {
  func.func @_kmeans_mask_kernel(%arg0: i32, %arg1: i32, %arg2: i32, %arg3: memref<1x1x64x32xf32, #tpu.memory_space<vmem>>, %arg4: memref<1x1x64x32xf32, #tpu.memory_space<vmem>>, %arg5: memref<1x4x32xf32, #tpu.memory_space<vmem>>, %arg6: memref<1x1x64x64xi8, #tpu.memory_space<vmem>>, %arg7: memref<64x1xi32, #tpu.memory_space<vmem>>, %arg8: memref<1x64xi32, #tpu.memory_space<vmem>>) attributes {dimension_semantics = [#tpu.dimension_semantics<parallel>, #tpu.dimension_semantics<parallel>, #tpu.dimension_semantics<arbitrary>], iteration_bounds = array<i64: 2, 2, 1>, scalar_prefetch = 0 : i64, scratch_operands = 2 : i64, tpu.core_type = #tpu.core_type<tc>, window_params = [{transform_indices = @transform_0, window_bounds = array<i64: 1, 1, 64, 32>}, {transform_indices = @transform_1, window_bounds = array<i64: 1, 1, 64, 32>}, {transform_indices = @transform_2, window_bounds = array<i64: 1, 4, 32>}, {transform_indices = @transform_3, window_bounds = array<i64: 1, 1, 64, 64>}]} {
    %c0_i32 = arith.constant 0 : i32
    %0 = arith.cmpi eq, %arg2, %c0_i32 : i32
    %1 = arith.extui %0 : i1 to i32
    %c0_i32_0 = arith.constant 0 : i32
    %2 = arith.cmpi ne, %1, %c0_i32_0 : i32
    scf.if %2 {
      %c0_8 = arith.constant 0 : index
      %c0_9 = arith.constant 0 : index
      %c0_10 = arith.constant 0 : index
      %c0_11 = arith.constant 0 : index
      %23 = vector.load %arg3[%c0_8, %c0_9, %c0_10, %c0_11] : memref<1x1x64x32xf32, #tpu.memory_space<vmem>>, vector<1x1x64x32xf32>
      %24 = vector.shape_cast %23 : vector<1x1x64x32xf32> to vector<64x32xf32>
      %c0_12 = arith.constant 0 : index
      %c0_13 = arith.constant 0 : index
      %c0_14 = arith.constant 0 : index
      %c0_15 = arith.constant 0 : index
      %25 = vector.load %arg4[%c0_12, %c0_13, %c0_14, %c0_15] : memref<1x1x64x32xf32, #tpu.memory_space<vmem>>, vector<1x1x64x32xf32>
      %26 = vector.shape_cast %25 : vector<1x1x64x32xf32> to vector<64x32xf32>
      %c0_16 = arith.constant 0 : index
      %c0_17 = arith.constant 0 : index
      %c0_18 = arith.constant 0 : index
      %27 = vector.load %arg5[%c0_16, %c0_17, %c0_18] : memref<1x4x32xf32, #tpu.memory_space<vmem>>, vector<1x4x32xf32>
      %28 = vector.shape_cast %27 : vector<1x4x32xf32> to vector<4x32xf32>
      %29 = arith.mulf %24, %24 : vector<64x32xf32>
      %cst = arith.constant dense<0.000000e+00> : vector<64xf32>
      %30 = vector.multi_reduction <add>, %29, %cst [1] : vector<64x32xf32> to vector<64xf32>
      %31 = vector.shape_cast %30 : vector<64xf32> to vector<64x1xf32>
      %32 = math.sqrt %31 : vector<64x1xf32>
      %cst_19 = arith.constant 9.99999996E-13 : f32
      %33 = vector.broadcast %cst_19 : f32 to vector<64x1xf32>
      %34 = arith.maximumf %32, %33 : vector<64x1xf32>
      %35 = vector.broadcast %34 : vector<64x1xf32> to vector<64x32xf32>
      %36 = arith.divf %24, %35 : vector<64x32xf32>
      %37 = arith.mulf %26, %26 : vector<64x32xf32>
      %cst_20 = arith.constant dense<0.000000e+00> : vector<64xf32>
      %38 = vector.multi_reduction <add>, %37, %cst_20 [1] : vector<64x32xf32> to vector<64xf32>
      %39 = vector.shape_cast %38 : vector<64xf32> to vector<64x1xf32>
      %40 = math.sqrt %39 : vector<64x1xf32>
      %cst_21 = arith.constant 9.99999996E-13 : f32
      %41 = vector.broadcast %cst_21 : f32 to vector<64x1xf32>
      %42 = arith.maximumf %40, %41 : vector<64x1xf32>
      %43 = vector.broadcast %42 : vector<64x1xf32> to vector<64x32xf32>
      %44 = arith.divf %26, %43 : vector<64x32xf32>
      %cst_22 = arith.constant dense<0.000000e+00> : vector<64x4xf32>
      %45 = tpu.matmul %36, %28, %cst_22 {dimension_numbers = #tpu.dot_dimension_numbers<[1], [1], [0], [0], [0, 0, 1, 0], [], []>} : vector<64x32xf32>, vector<4x32xf32>, vector<64x4xf32> -> vector<64x4xf32>
      %cst_23 = arith.constant dense<0.000000e+00> : vector<4x64xf32>
      %46 = tpu.matmul %28, %44, %cst_23 {dimension_numbers = #tpu.dot_dimension_numbers<[1], [1], [0], [0], [0, 0, 1, 0], [], []>} : vector<4x32xf32>, vector<64x32xf32>, vector<4x64xf32> -> vector<4x64xf32>
      %c0_i32_24 = arith.constant 0 : i32
      %c15_i32 = arith.constant 15 : i32
      %47 = arith.addi %c0_i32_24, %c15_i32 : i32
      %c1_i32 = arith.constant 1 : i32
      %48 = scf.for %arg9 = %c0_i32_24 to %47 step %c1_i32 iter_args(%arg10 = %45) -> (vector<64x4xf32>)  : i32 {
        %cst_38 = arith.constant dense<0xFF800000> : vector<4xf32>
        %71 = vector.multi_reduction <maximumf>, %arg10, %cst_38 [0] : vector<64x4xf32> to vector<4xf32>
        %72 = vector.shape_cast %71 : vector<4xf32> to vector<1x4xf32>
        %73 = vector.broadcast %72 : vector<1x4xf32> to vector<64x4xf32>
        %74 = arith.cmpf oge, %arg10, %73 : vector<64x4xf32>
        %cst_39 = arith.constant 0xFF800000 : f32
        %75 = vector.broadcast %cst_39 : f32 to vector<64x4xf32>
        %76 = arith.select %74, %75, %arg10 : vector<64x4xi1>, vector<64x4xf32>
        scf.yield %76 : vector<64x4xf32>
      }
      %cst_25 = arith.constant dense<0xFF800000> : vector<4xf32>
      %49 = vector.multi_reduction <maximumf>, %48, %cst_25 [0] : vector<64x4xf32> to vector<4xf32>
      %50 = vector.shape_cast %49 : vector<4xf32> to vector<1x4xf32>
      %c0_i32_26 = arith.constant 0 : i32
      %c15_i32_27 = arith.constant 15 : i32
      %51 = arith.addi %c0_i32_26, %c15_i32_27 : i32
      %c1_i32_28 = arith.constant 1 : i32
      %52 = scf.for %arg9 = %c0_i32_26 to %51 step %c1_i32_28 iter_args(%arg10 = %46) -> (vector<4x64xf32>)  : i32 {
        %cst_38 = arith.constant dense<0xFF800000> : vector<4xf32>
        %71 = vector.multi_reduction <maximumf>, %arg10, %cst_38 [1] : vector<4x64xf32> to vector<4xf32>
        %72 = vector.shape_cast %71 : vector<4xf32> to vector<4x1xf32>
        %73 = vector.broadcast %72 : vector<4x1xf32> to vector<4x64xf32>
        %74 = arith.cmpf oge, %arg10, %73 : vector<4x64xf32>
        %cst_39 = arith.constant 0xFF800000 : f32
        %75 = vector.broadcast %cst_39 : f32 to vector<4x64xf32>
        %76 = arith.select %74, %75, %arg10 : vector<4x64xi1>, vector<4x64xf32>
        scf.yield %76 : vector<4x64xf32>
      }
      %cst_29 = arith.constant dense<0xFF800000> : vector<4xf32>
      %53 = vector.multi_reduction <maximumf>, %52, %cst_29 [1] : vector<4x64xf32> to vector<4xf32>
      %54 = vector.shape_cast %53 : vector<4xf32> to vector<4x1xf32>
      %55 = vector.broadcast %50 : vector<1x4xf32> to vector<64x4xf32>
      %56 = arith.cmpf oge, %45, %55 : vector<64x4xf32>
      %57 = vector.broadcast %54 : vector<4x1xf32> to vector<4x64xf32>
      %58 = arith.cmpf oge, %46, %57 : vector<4x64xf32>
      %59 = tpu.iota {dimensions = array<i32: 1>} : vector<64x4xi32>
      %c4_i32_30 = arith.constant 4 : i32
      %60 = vector.broadcast %c4_i32_30 : i32 to vector<64x4xi32>
      %61 = arith.select %56, %59, %60 : vector<64x4xi1>, vector<64x4xi32>
      %cst_31 = arith.constant dense<2147483647> : vector<64xi32>
      %62 = vector.multi_reduction <minsi>, %61, %cst_31 [1] : vector<64x4xi32> to vector<64xi32>
      %63 = vector.shape_cast %62 : vector<64xi32> to vector<64x1xi32>
      %c0_32 = arith.constant 0 : index
      %c0_33 = arith.constant 0 : index
      %64 = vector.load %arg7[%c0_32, %c0_33] : memref<64x1xi32, #tpu.memory_space<vmem>>, vector<64x1xi32>
      tpu.vector_store %arg7[%c0_32, %c0_33], %63 {strides = array<i32>} : memref<64x1xi32, #tpu.memory_space<vmem>>, vector<64x1xi32>,
      %65 = tpu.iota {dimensions = array<i32: 0>} : vector<4x64xi32>
      %c4_i32_34 = arith.constant 4 : i32
      %66 = vector.broadcast %c4_i32_34 : i32 to vector<4x64xi32>
      %67 = arith.select %58, %65, %66 : vector<4x64xi1>, vector<4x64xi32>
      %cst_35 = arith.constant dense<2147483647> : vector<64xi32>
      %68 = vector.multi_reduction <minsi>, %67, %cst_35 [0] : vector<4x64xi32> to vector<64xi32>
      %69 = vector.shape_cast %68 : vector<64xi32> to vector<1x64xi32>
      %c0_36 = arith.constant 0 : index
      %c0_37 = arith.constant 0 : index
      %70 = vector.load %arg8[%c0_36, %c0_37] : memref<1x64xi32, #tpu.memory_space<vmem>>, vector<1x64xi32>
      tpu.vector_store %arg8[%c0_36, %c0_37], %69 {strides = array<i32>} : memref<1x64xi32, #tpu.memory_space<vmem>>, vector<1x64xi32>,
    } else {
    }
    %c64_i32 = arith.constant 64 : i32
    %3 = arith.muli %arg2, %c64_i32 : i32
    %4 = tpu.assume_multiple %3, 64 : i32
    %5 = arith.index_cast %4 : i32 to index
    %c0 = arith.constant 0 : index
    %6 = vector.load %arg7[%5, %c0] : memref<64x1xi32, #tpu.memory_space<vmem>>, vector<64x1xi32>
    %c0_1 = arith.constant 0 : index
    %c0_2 = arith.constant 0 : index
    %7 = vector.load %arg8[%c0_1, %c0_2] : memref<1x64xi32, #tpu.memory_space<vmem>>, vector<1x64xi32>
    %8 = vector.broadcast %6 : vector<64x1xi32> to vector<64x64xi32>
    %9 = vector.broadcast %7 : vector<1x64xi32> to vector<64x64xi32>
    %10 = arith.cmpi eq, %8, %9 : vector<64x64xi32>
    %c4_i32 = arith.constant 4 : i32
    %11 = vector.broadcast %c4_i32 : i32 to vector<64x1xi32>
    %12 = arith.cmpi ne, %6, %11 : vector<64x1xi32>
    %13 = vector.broadcast %12 : vector<64x1xi1> to vector<64x64xi1>
    %14 = arith.andi %10, %13 : vector<64x64xi1>
    %c4_i32_3 = arith.constant 4 : i32
    %15 = vector.broadcast %c4_i32_3 : i32 to vector<1x64xi32>
    %16 = arith.cmpi ne, %7, %15 : vector<1x64xi32>
    %17 = vector.broadcast %16 : vector<1x64xi1> to vector<64x64xi1>
    %18 = arith.andi %14, %17 : vector<64x64xi1>
    %19 = arith.extui %18 : vector<64x64xi1> to vector<64x64xi8>
    %c0_4 = arith.constant 0 : index
    %c0_5 = arith.constant 0 : index
    %c0_6 = arith.constant 0 : index
    %c0_7 = arith.constant 0 : index
    %20 = vector.load %arg6[%c0_4, %c0_5, %c0_6, %c0_7] : memref<1x1x64x64xi8, #tpu.memory_space<vmem>>, vector<1x1x64x64xi8>
    %21 = vector.shape_cast %20 : vector<1x1x64x64xi8> to vector<64x64xi8>
    %22 = vector.shape_cast %19 : vector<64x64xi8> to vector<1x1x64x64xi8>
    tpu.vector_store %arg6[%c0_4, %c0_5, %c0_6, %c0_7], %22 {strides = array<i32>} : memref<1x1x64x64xi8, #tpu.memory_space<vmem>>, vector<1x1x64x64xi8>,
    return
  }
  func.func @transform_0(%arg0: i32, %arg1: i32, %arg2: i32) -> (i32, i32, i32, i32) {
    %c0_i32 = arith.constant 0 : i32
    %c0_i32_0 = arith.constant 0 : i32
    %c0_i32_1 = arith.constant 0 : i32
    return %arg0, %arg1, %c0_i32, %c0_i32_0 : i32, i32, i32, i32
  }
  func.func @transform_1(%arg0: i32, %arg1: i32, %arg2: i32) -> (i32, i32, i32, i32) {
    %c0_i32 = arith.constant 0 : i32
    %c0_i32_0 = arith.constant 0 : i32
    %c0_i32_1 = arith.constant 0 : i32
    return %arg0, %arg1, %c0_i32, %c0_i32_0 : i32, i32, i32, i32
  }
  func.func @transform_2(%arg0: i32, %arg1: i32, %arg2: i32) -> (i32, i32, i32) {
    %c0_i32 = arith.constant 0 : i32
    %c0_i32_0 = arith.constant 0 : i32
    %c0_i32_1 = arith.constant 0 : i32
    return %arg1, %c0_i32, %c0_i32_0 : i32, i32, i32
  }
  func.func @transform_3(%arg0: i32, %arg1: i32, %arg2: i32) -> (i32, i32, i32, i32) {
    %c0_i32 = arith.constant 0 : i32
    %c0_i32_0 = arith.constant 0 : i32
    return %arg0, %arg1, %arg2, %c0_i32 : i32, i32, i32, i32
  }
}

</mosaic_0001>

<llo_original>
// kernel: tpu_custom_call.1
$region0: #{tpu_custom_call.1}
  #allocation0 [shape = 'u32[]', space=smem, size = 0x4, offset = 0x4, fixed_abs, tag = 'smem constant byte address 0x4 - core index']
  #allocation1 [shape = 'u32[144,128]{1,0:T(1,128)}', space=vmem, size = 0x12000, scoped, tag = 'internal scratch']
  #allocation2 [shape = 's32[64,1]{1,0:T(8,128)}', space=vmem, size = 0x8000, scoped, tag = 'scratch operand']
  #allocation3 [shape = 's32[1,64]{1,0:T(1,128)}', space=vmem, size = 0x200, scoped, tag = 'scratch operand']
  %s0 = inlined_call_operand.vmem [shape: f32[2,2,64,32], index: 0, kind: input, shape index: {}]
  %s1 = inlined_call_operand.vmem [shape: f32[2,2,64,32], index: 1, kind: input, shape index: {}]
  %s2 = inlined_call_operand.vmem [shape: f32[2,4,32], index: 2, kind: input, shape index: {}]
  %s3 = inlined_call_operand.hbm [shape: s8[2,2,64,64], index: 3, kind: output, shape index: {}]
  %s4 = sld [smem:[#allocation0]]
  $region63: #{tpu_custom_call.1} parent=0
    _
  %s6 = ssub.s32 1, %s4
  %s7 = scalar_select 0, %s6, %s4
  $region1: #{tpu_custom_call.1} parent=0
    #allocation4 [shape = 'u8[16384]{0}', space=vmem, size = 0x4000, scoped, tag = 'output window, operand 0']
    #allocation5 [shape = 's32[2]{0}', space=sflag, size = 0x8, scoped, tag = 'scoped memory for tpu_custom_call.1']
    %8 = vsyncpa [#allocation5], 0
    %s9 = scalar_lea.sflag [#allocation5], 1
    %10 = vsyncpa %s9, 0
    loop: start=0, step=1, limit=6
    $region2: #{tpu_custom_call.1} parent=1 // loop_pre_header
      _
    $region3: #{tpu_custom_call.1} parent=1 // loop_header
      %s12 = sphi 0, %s16
      %p13 = scmp.ge.s32.totalorder %s12, 6
      %s19 = sphi 0, %s38
      %s20 = sphi 0, %s34
      %s21 = sphi 0, %s30
      %s22 = sphi 0, %s19
      %s23 = sphi 0, %s20
      %s24 = sphi 0, %s21
      %s25 = sphi 0, %s22
      %s26 = sphi 0, %s23
      %s27 = sphi 0, %s24
      %s43 = sphi 0, %s45
      %s46 = sphi 0, %s43
      %s47 = sphi 0, %s46
      %s63 = sphi 0, %s47
      %s71 = sphi 0, %s73
      %s74 = sphi 0, %s71
      %s75 = sphi 0, %s74
      %s91 = sphi 0, %s75
      %s97 = sphi 0, %s99
      %s100 = sphi 0, %s97
      %s101 = sphi 0, %s100
      %s117 = sphi 0, %s101
      %s127 = sphi 0, %s129
      %s130 = sphi 0, %s127
      %s131 = sphi 0, %s130
      %s147 = sphi 0, %s131
    $region4: #{tpu_custom_call.1} parent=1 // loop_header_branch
      %15 = sbr.rel (%p13) target = $region8
    $region5: #{tpu_custom_call.1} parent=1 // loop_body
      %s17 = ssub.s32 %s12, 1
      %s18 = ssub.s32 %s12, 2
      %s28 = sadd.s32 1, %s21
      %p29 = scmp.ge.s32.totalorder %s28, 1
      %s30 = scalar_select %p29, 0, %s28
      %s31 = sadd.s32 1, %s20
      %s32 = scalar_select %p29, %s31, %s20
      %p33 = scmp.ge.s32.totalorder %s32, 2
      %s34 = scalar_select %p33, 0, %s32
      %s35 = sadd.s32 1, %s19
      %s36 = scalar_select %p33, %s35, %s19
      %p37 = scmp.ge.s32.totalorder %s36, 2
      %s38 = scalar_select %p37, 0, %s36
      %s39 = ssub.s32 %s19, %s38
      %s40 = ssub.s32 %s20, %s34
      %s41 = sor.u32 %s39, %s40
      %p42 = scmp.eq.s32.totalorder %s41, 0
      %s44 = sadd.s32 %s43, 1
      %s45 = scalar_select %p42, %s43, %s44
      %p48 = pneg %p42
      %p49 = scmp.eq.s32.totalorder %s12, 3
      %p50 = por %p48, %p49
      %p51 = scmp.ne.s32.totalorder %s43, %s46
      %p52 = scmp.eq.s32.totalorder %s12, 0
      %p53 = por %p51, %p52
      %p54 = scmp.ne.s32.totalorder %s43, %s46
      %p55 = scmp.eq.s32.totalorder %s17, 3
      %p56 = por %p54, %p55
      %p57 = scmp.ne.s32.totalorder %s46, %s47
      %p58 = scmp.eq.s32.totalorder %s17, 0
      %p59 = por %p57, %p58
      %p60 = scmp.ne.s32.totalorder %s46, %s47
      %p61 = scmp.eq.s32.totalorder %s18, 3
      %p62 = por %p60, %p61
      %p64 = scmp.ne.s32.totalorder %s47, %s63
      %p65 = scmp.eq.s32.totalorder %s18, 0
      %p66 = por %p64, %p65
      %s67 = ssub.s32 %s19, %s38
      %s68 = ssub.s32 %s20, %s34
      %s69 = sor.u32 %s67, %s68
      %p70 = scmp.eq.s32.totalorder %s69, 0
      %s72 = sadd.s32 %s71, 1
      %s73 = scalar_select %p70, %s71, %s72
      %p76 = pneg %p70
      %p77 = scmp.eq.s32.totalorder %s12, 3
      %p78 = por %p76, %p77
      %p79 = scmp.ne.s32.totalorder %s71, %s74
      %p80 = scmp.eq.s32.totalorder %s12, 0
      %p81 = por %p79, %p80
      %p82 = scmp.ne.s32.totalorder %s71, %s74
      %p83 = scmp.eq.s32.totalorder %s17, 3
      %p84 = por %p82, %p83
      %p85 = scmp.ne.s32.totalorder %s74, %s75
      %p86 = scmp.eq.s32.totalorder %s17, 0
      %p87 = por %p85, %p86
      %p88 = scmp.ne.s32.totalorder %s74, %s75
      %p89 = scmp.eq.s32.totalorder %s18, 3
      %p90 = por %p88, %p89
      %p92 = scmp.ne.s32.totalorder %s75, %s91
      %p93 = scmp.eq.s32.totalorder %s18, 0
      %p94 = por %p92, %p93
      %s95 = ssub.s32 %s20, %s34
      %p96 = scmp.eq.s32.totalorder %s95, 0
      %s98 = sadd.s32 %s97, 1
      %s99 = scalar_select %p96, %s97, %s98
      %p102 = pneg %p96
      %p103 = scmp.eq.s32.totalorder %s12, 3
      %p104 = por %p102, %p103
      %p105 = scmp.ne.s32.totalorder %s97, %s100
      %p106 = scmp.eq.s32.totalorder %s12, 0
      %p107 = por %p105, %p106
      %p108 = scmp.ne.s32.totalorder %s97, %s100
      %p109 = scmp.eq.s32.totalorder %s17, 3
      %p110 = por %p108, %p109
      %p111 = scmp.ne.s32.totalorder %s100, %s101
      %p112 = scmp.eq.s32.totalorder %s17, 0
      %p113 = por %p111, %p112
      %p114 = scmp.ne.s32.totalorder %s100, %s101
      %p115 = scmp.eq.s32.totalorder %s18, 3
      %p116 = por %p114, %p115
      %p118 = scmp.ne.s32.totalorder %s101, %s117
      %p119 = scmp.eq.s32.totalorder %s18, 0
      %p120 = por %p118, %p119
      %s121 = ssub.s32 %s19, %s38
      %s122 = ssub.s32 %s20, %s34
      %s123 = sor.u32 %s121, %s122
      %s124 = ssub.s32 %s21, %s30
      %s125 = sor.u32 %s123, %s124
      %p126 = scmp.eq.s32.totalorder %s125, 0
      %s128 = sadd.s32 %s127, 1
      %s129 = scalar_select %p126, %s127, %s128
      %p132 = pneg %p126
      %p133 = scmp.eq.s32.totalorder %s12, 3
      %p134 = por %p132, %p133
      %p135 = scmp.ne.s32.totalorder %s127, %s130
      %p136 = scmp.eq.s32.totalorder %s12, 0
      %p137 = por %p135, %p136
      %p138 = scmp.ne.s32.totalorder %s127, %s130
      %p139 = scmp.eq.s32.totalorder %s17, 3
      %p140 = por %p138, %p139
      %p141 = scmp.ne.s32.totalorder %s130, %s131
      %p142 = scmp.eq.s32.totalorder %s17, 0
      %p143 = por %p141, %p142
      %p144 = scmp.ne.s32.totalorder %s130, %s131
      %p145 = scmp.eq.s32.totalorder %s18, 3
      %p146 = por %p144, %p145
      %p148 = scmp.ne.s32.totalorder %s131, %s147
      %p149 = scmp.eq.s32.totalorder %s18, 0
      %p150 = por %p148, %p149
      %p151 = scmp.le.s32.totalorder 1, %s12
      %p152 = scmp.lt.s32.totalorder %s12, 5
      %p153 = pnand %p151, %p152
      %p154 = pneg %p153
      // Predicated region
      $region9: #{tpu_custom_call.1} parent=5 // pred_check
        _
      $region10: #{tpu_custom_call.1} parent=5 // pred_check_branch
        %156 = sbr.rel (%p153) target = $region12
      $region11: #{tpu_custom_call.1} parent=5 // pred_region
        %s157 = ssub.s32 %s12, 1
      $region12: #{tpu_custom_call.1} parent=5 // pred_fallthru
        _
      %p158 = scmp.lt.s32.totalorder %s12, 4
      // Predicated region
      $region13: #{tpu_custom_call.1} parent=5 // pred_check
        %p159 = pneg %p158
      $region14: #{tpu_custom_call.1} parent=5 // pred_check_branch
        %161 = sbr.rel (%p159) target = $region16
      $region15: #{tpu_custom_call.1} parent=5 // pred_region
        // Predicated region
        $region17: #{tpu_custom_call.1} parent=15 // pred_check
          %p162 = pneg %p53
        $region18: #{tpu_custom_call.1} parent=15 // pred_check_branch
          %164 = sbr.rel (%p162) target = $region20
        $region19: #{tpu_custom_call.1} parent=15 // pred_region
          %p165 = scmp.lt.s32.totalorder %s19, 1
          %s166 = scalar_select %p165, %s19, 1
          %p167 = scmp.lt.s32.totalorder %s20, 1
          %s168 = scalar_select %p167, %s20, 1
          %s169 = smul.addr %s168, 8
          %s170 = smul.addr %s166, 16
          %s171 = sadd.s32 %s169, %s170
          %s172 = smul.addr %s171, 8
          %s173 = scalar_lea.vmem %s0, %s172
        $region20: #{tpu_custom_call.1} parent=15 // pred_fallthru
          _
        // Predicated region
        $region21: #{tpu_custom_call.1} parent=15 // pred_check
          %p174 = pneg %p81
        $region22: #{tpu_custom_call.1} parent=15 // pred_check_branch
          %176 = sbr.rel (%p174) target = $region24
        $region23: #{tpu_custom_call.1} parent=15 // pred_region
          %p177 = scmp.lt.s32.totalorder %s19, 1
          %s178 = scalar_select %p177, %s19, 1
          %p179 = scmp.lt.s32.totalorder %s20, 1
          %s180 = scalar_select %p179, %s20, 1
          %s181 = smul.addr %s180, 8
          %s182 = smul.addr %s178, 16
          %s183 = sadd.s32 %s181, %s182
          %s184 = smul.addr %s183, 8
          %s185 = scalar_lea.vmem %s1, %s184
        $region24: #{tpu_custom_call.1} parent=15 // pred_fallthru
          _
        // Predicated region
        $region25: #{tpu_custom_call.1} parent=15 // pred_check
          %p186 = pneg %p107
        $region26: #{tpu_custom_call.1} parent=15 // pred_check_branch
          %188 = sbr.rel (%p186) target = $region28
        $region27: #{tpu_custom_call.1} parent=15 // pred_region
          %p189 = scmp.lt.s32.totalorder %s20, 1
          %s190 = scalar_select %p189, %s20, 1
          %s191 = smul.addr %s190, 4
          %s192 = scalar_lea.vmem %s2, %s191
        $region28: #{tpu_custom_call.1} parent=15 // pred_fallthru
          _
      $region16: #{tpu_custom_call.1} parent=5 // pred_fallthru
        _
      %p193 = scmp.le.s32.totalorder 1, %s12
      %p194 = scmp.lt.s32.totalorder %s12, 5
      %p195 = pnand %p193, %p194
      %p196 = pneg %p195
      // Predicated region
      $region29: #{tpu_custom_call.1} parent=5 // pred_check
        _
      $region30: #{tpu_custom_call.1} parent=5 // pred_check_branch
        %198 = sbr.rel (%p195) target = $region32
      $region31: #{tpu_custom_call.1} parent=5 // pred_region
        %s199 = ssub.s32 %s12, 1
        %p200 = scmp.lt.s32.totalorder %s22, 1
        %s201 = scalar_select %p200, %s22, 1
        %p202 = scmp.lt.s32.totalorder %s23, 1
        %s203 = scalar_select %p202, %s23, 1
        %s204 = smul.addr %s203, 8
        %s205 = smul.addr %s201, 16
        %s206 = sadd.s32 %s204, %s205
        %s207 = smul.addr %s206, 8
        %s208 = scalar_lea.vmem %s0, %s207
        %p209 = pneg %p59
        %p210 = pneg %p56
        %p211 = scmp.lt.s32.totalorder %s22, 1
        %s212 = scalar_select %p211, %s22, 1
        %p213 = scmp.lt.s32.totalorder %s23, 1
        %s214 = scalar_select %p213, %s23, 1
        %s215 = smul.addr %s214, 8
        %s216 = smul.addr %s212, 16
        %s217 = sadd.s32 %s215, %s216
        %s218 = smul.addr %s217, 8
        %s219 = scalar_lea.vmem %s1, %s218
        %p220 = pneg %p87
        %p221 = pneg %p84
        %p222 = scmp.lt.s32.totalorder %s23, 1
        %s223 = scalar_select %p222, %s23, 1
        %s224 = smul.addr %s223, 4
        %s225 = scalar_lea.vmem %s2, %s224
        %p226 = pneg %p113
        %p227 = pneg %p110
        %p228 = pneg %p143
        %p229 = pneg %p140
        %s230 = sand.u32 %s130, 1
        %s231 = scalar_lea.sflag [#allocation5], %s230
        %s232 = sand.u32 %s130, 1
        %s233 = smul.addr %s232, 16
        %s234 = scalar_lea.vmem [#allocation4], %s233
        %p235 = scmp.lt.s32.totalorder %s22, 1
        %s236 = scalar_select %p235, %s22, 1
        %p237 = scmp.lt.s32.totalorder %s23, 1
        %s238 = scalar_select %p237, %s23, 1
        %s239 = smul.addr %s238, 8
        %s240 = smul.addr %s236, 16
        %s241 = sadd.s32 %s239, %s240
        %s242 = smul.addr %s241, 8
        %s243 = scalar_lea.vmem %s0, %s242
        %p244 = scmp.lt.s32.totalorder %s22, 1
        %s245 = scalar_select %p244, %s22, 1
        %p246 = scmp.lt.s32.totalorder %s23, 1
        %s247 = scalar_select %p246, %s23, 1
        %s248 = smul.addr %s247, 8
        %s249 = smul.addr %s245, 16
        %s250 = sadd.s32 %s248, %s249
        %s251 = smul.addr %s250, 8
        %s252 = scalar_lea.vmem %s1, %s251
        %p253 = scmp.lt.s32.totalorder %s23, 1
        %s254 = scalar_select %p253, %s23, 1
        %s255 = smul.addr %s254, 4
        %s256 = scalar_lea.vmem %s2, %s255
        %s257 = smul.u32 2, %s24
        %p260 = scmp.eq.s32.totalorder %s24, 0
        // Predicated region
        $region33: #{tpu_custom_call.1} parent=31 // pred_check
          %p261 = pneg %p260
        $region34: #{tpu_custom_call.1} parent=31 // pred_check_branch
          %263 = sbr.rel (%p261) target = $region36
        $region35: #{tpu_custom_call.1} parent=31 // pred_region
          %v264 = vld [vmem:[%s243] sm:$0xff]
          %v265 = vld [vmem:[%s243 + $0x8] sm:$0xff]
          %v266 = vld [vmem:[%s243 + $0x10] sm:$0xff]
          %v267 = vld [vmem:[%s243 + $0x18] sm:$0xff]
          %v268 = vld [vmem:[%s243 + $0x20] sm:$0xff]
          %v269 = vld [vmem:[%s243 + $0x28] sm:$0xff]
          %v270 = vld [vmem:[%s243 + $0x30] sm:$0xff]
          %v271 = vld [vmem:[%s243 + $0x38] sm:$0xff]
          %v272 = vld [vmem:[%s252] sm:$0xff]
          %v273 = vld [vmem:[%s252 + $0x8] sm:$0xff]
          %v274 = vld [vmem:[%s252 + $0x10] sm:$0xff]
          %v275 = vld [vmem:[%s252 + $0x18] sm:$0xff]
          %v276 = vld [vmem:[%s252 + $0x20] sm:$0xff]
          %v277 = vld [vmem:[%s252 + $0x28] sm:$0xff]
          %v278 = vld [vmem:[%s252 + $0x30] sm:$0xff]
          %v279 = vld [vmem:[%s252 + $0x38] sm:$0xff]
          %v280 = vld [vmem:[%s256] sm:$0xf]
          %v281 = vmul.f32 %v264, %v264
          %v282 = vmul.f32 %v265, %v265
          %v283 = vmul.f32 %v266, %v266
          %v284 = vmul.f32 %v267, %v267
          %v285 = vmul.f32 %v268, %v268
          %v286 = vmul.f32 %v269, %v269
          %v287 = vmul.f32 %v270, %v270
          %v288 = vmul.f32 %v271, %v271
          %vm289 = vcmask 261120
          %v290 = vsel %vm289, %v281, 0.0
          %291 = vadd.xlane.f32.xlu0 %v290
          %v292 = vpop.xlane.xlu0 %291
          %v293 = vsel %vm289, %v282, 0.0
          %294 = vadd.xlane.f32.xlu0 %v293
          %v295 = vpop.xlane.xlu0 %294
          %v296 = vsel %vm289, %v283, 0.0
          %297 = vadd.xlane.f32.xlu0 %v296
          %v298 = vpop.xlane.xlu0 %297
          %v299 = vsel %vm289, %v284, 0.0
          %300 = vadd.xlane.f32.xlu0 %v299
          %v301 = vpop.xlane.xlu0 %300
          %v302 = vsel %vm289, %v285, 0.0
          %303 = vadd.xlane.f32.xlu0 %v302
          %v304 = vpop.xlane.xlu0 %303
          %v305 = vsel %vm289, %v286, 0.0
          %306 = vadd.xlane.f32.xlu0 %v305
          %v307 = vpop.xlane.xlu0 %306
          %v308 = vsel %vm289, %v287, 0.0
          %309 = vadd.xlane.f32.xlu0 %v308
          %v310 = vpop.xlane.xlu0 %309
          %v311 = vsel %vm289, %v288, 0.0
          %312 = vadd.xlane.f32.xlu0 %v311
          %v313 = vpop.xlane.xlu0 %312
          %v314 = vrsqrt.pop %v292
          %v315 = vmul.f32 %v292, %v314
          %vm316 = vcmp.eq.f32.partialorder %v292, inf
          %v317 = vsel %vm316, %v292, %v315
          %vm318 = vcmp.eq.f32.partialorder %v292, 0.0
          %v319 = vand.u32 %v292, 2147483648
          %v320 = vsel %vm318, %v319, %v317
          %v321 = vrsqrt.pop %v295
          %v322 = vmul.f32 %v295, %v321
          %vm323 = vcmp.eq.f32.partialorder %v295, inf
          %v324 = vsel %vm323, %v295, %v322
          %vm325 = vcmp.eq.f32.partialorder %v295, 0.0
          %v326 = vand.u32 %v295, 2147483648
          %v327 = vsel %vm325, %v326, %v324
          %v328 = vrsqrt.pop %v298
          %v329 = vmul.f32 %v298, %v328
          %vm330 = vcmp.eq.f32.partialorder %v298, inf
          %v331 = vsel %vm330, %v298, %v329
          %vm332 = vcmp.eq.f32.partialorder %v298, 0.0
          %v333 = vand.u32 %v298, 2147483648
          %v334 = vsel %vm332, %v333, %v331
          %v335 = vrsqrt.pop %v301
          %v336 = vmul.f32 %v301, %v335
          %vm337 = vcmp.eq.f32.partialorder %v301, inf
          %v338 = vsel %vm337, %v301, %v336
          %vm339 = vcmp.eq.f32.partialorder %v301, 0.0
          %v340 = vand.u32 %v301, 2147483648
          %v341 = vsel %vm339, %v340, %v338
          %v342 = vrsqrt.pop %v304
          %v343 = vmul.f32 %v304, %v342
          %vm344 = vcmp.eq.f32.partialorder %v304, inf
          %v345 = vsel %vm344, %v304, %v343
          %vm346 = vcmp.eq.f32.partialorder %v304, 0.0
          %v347 = vand.u32 %v304, 2147483648
          %v348 = vsel %vm346, %v347, %v345
          %v349 = vrsqrt.pop %v307
          %v350 = vmul.f32 %v307, %v349
          %vm351 = vcmp.eq.f32.partialorder %v307, inf
          %v352 = vsel %vm351, %v307, %v350
          %vm353 = vcmp.eq.f32.partialorder %v307, 0.0
          %v354 = vand.u32 %v307, 2147483648
          %v355 = vsel %vm353, %v354, %v352
          %v356 = vrsqrt.pop %v310
          %v357 = vmul.f32 %v310, %v356
          %vm358 = vcmp.eq.f32.partialorder %v310, inf
          %v359 = vsel %vm358, %v310, %v357
          %vm360 = vcmp.eq.f32.partialorder %v310, 0.0
          %v361 = vand.u32 %v310, 2147483648
          %v362 = vsel %vm360, %v361, %v359
          %v363 = vrsqrt.pop %v313
          %v364 = vmul.f32 %v313, %v363
          %vm365 = vcmp.eq.f32.partialorder %v313, inf
          %v366 = vsel %vm365, %v313, %v364
          %vm367 = vcmp.eq.f32.partialorder %v313, 0.0
          %v368 = vand.u32 %v313, 2147483648
          %v369 = vsel %vm367, %v368, %v366
          %v370 = vmax.f32 %v320, 1e-12
          %v371 = vmax.f32 %v327, 1e-12
          %v372 = vmax.f32 %v334, 1e-12
          %v373 = vmax.f32 %v341, 1e-12
          %v374 = vmax.f32 %v348, 1e-12
          %v375 = vmax.f32 %v355, 1e-12
          %v376 = vmax.f32 %v362, 1e-12
          %v377 = vmax.f32 %v369, 1e-12
          %v378 = vrcp.pop %v370
          %v379 = vmul.f32 %v264, %v378
          %v380 = vrcp.pop %v371
          %v381 = vmul.f32 %v265, %v380
          %v382 = vrcp.pop %v372
          %v383 = vmul.f32 %v266, %v382
          %v384 = vrcp.pop %v373
          %v385 = vmul.f32 %v267, %v384
          %v386 = vrcp.pop %v374
          %v387 = vmul.f32 %v268, %v386
          %v388 = vrcp.pop %v375
          %v389 = vmul.f32 %v269, %v388
          %v390 = vrcp.pop %v376
          %v391 = vmul.f32 %v270, %v390
          %v392 = vrcp.pop %v377
          %v393 = vmul.f32 %v271, %v392
          %v394 = vmul.f32 %v272, %v272
          %v395 = vmul.f32 %v273, %v273
          %v396 = vmul.f32 %v274, %v274
          %v397 = vmul.f32 %v275, %v275
          %v398 = vmul.f32 %v276, %v276
          %v399 = vmul.f32 %v277, %v277
          %v400 = vmul.f32 %v278, %v278
          %v401 = vmul.f32 %v279, %v279
          %v402 = vsel %vm289, %v394, 0.0
          %403 = vadd.xlane.f32.xlu0 %v402
          %v404 = vpop.xlane.xlu0 %403
          %v405 = vsel %vm289, %v395, 0.0
          %406 = vadd.xlane.f32.xlu0 %v405
          %v407 = vpop.xlane.xlu0 %406
          %v408 = vsel %vm289, %v396, 0.0
          %409 = vadd.xlane.f32.xlu0 %v408
          %v410 = vpop.xlane.xlu0 %409
          %v411 = vsel %vm289, %v397, 0.0
          %412 = vadd.xlane.f32.xlu0 %v411
          %v413 = vpop.xlane.xlu0 %412
          %v414 = vsel %vm289, %v398, 0.0
          %415 = vadd.xlane.f32.xlu0 %v414
          %v416 = vpop.xlane.xlu0 %415
          %v417 = vsel %vm289, %v399, 0.0
          %418 = vadd.xlane.f32.xlu0 %v417
          %v419 = vpop.xlane.xlu0 %418
          %v420 = vsel %vm289, %v400, 0.0
          %421 = vadd.xlane.f32.xlu0 %v420
          %v422 = vpop.xlane.xlu0 %421
          %v423 = vsel %vm289, %v401, 0.0
          %424 = vadd.xlane.f32.xlu0 %v423
          %v425 = vpop.xlane.xlu0 %424
          %v426 = vrsqrt.pop %v404
          %v427 = vmul.f32 %v404, %v426
          %vm428 = vcmp.eq.f32.partialorder %v404, inf
          %v429 = vsel %vm428, %v404, %v427
          %vm430 = vcmp.eq.f32.partialorder %v404, 0.0
          %v431 = vand.u32 %v404, 2147483648
          %v432 = vsel %vm430, %v431, %v429
          %v433 = vrsqrt.pop %v407
          %v434 = vmul.f32 %v407, %v433
          %vm435 = vcmp.eq.f32.partialorder %v407, inf
          %v436 = vsel %vm435, %v407, %v434
          %vm437 = vcmp.eq.f32.partialorder %v407, 0.0
          %v438 = vand.u32 %v407, 2147483648
          %v439 = vsel %vm437, %v438, %v436
          %v440 = vrsqrt.pop %v410
          %v441 = vmul.f32 %v410, %v440
          %vm442 = vcmp.eq.f32.partialorder %v410, inf
          %v443 = vsel %vm442, %v410, %v441
          %vm444 = vcmp.eq.f32.partialorder %v410, 0.0
          %v445 = vand.u32 %v410, 2147483648
          %v446 = vsel %vm444, %v445, %v443
          %v447 = vrsqrt.pop %v413
          %v448 = vmul.f32 %v413, %v447
          %vm449 = vcmp.eq.f32.partialorder %v413, inf
          %v450 = vsel %vm449, %v413, %v448
          %vm451 = vcmp.eq.f32.partialorder %v413, 0.0
          %v452 = vand.u32 %v413, 2147483648
          %v453 = vsel %vm451, %v452, %v450
          %v454 = vrsqrt.pop %v416
          %v455 = vmul.f32 %v416, %v454
          %vm456 = vcmp.eq.f32.partialorder %v416, inf
          %v457 = vsel %vm456, %v416, %v455
          %vm458 = vcmp.eq.f32.partialorder %v416, 0.0
          %v459 = vand.u32 %v416, 2147483648
          %v460 = vsel %vm458, %v459, %v457
          %v461 = vrsqrt.pop %v419
          %v462 = vmul.f32 %v419, %v461
          %vm463 = vcmp.eq.f32.partialorder %v419, inf
          %v464 = vsel %vm463, %v419, %v462
          %vm465 = vcmp.eq.f32.partialorder %v419, 0.0
          %v466 = vand.u32 %v419, 2147483648
          %v467 = vsel %vm465, %v466, %v464
          %v468 = vrsqrt.pop %v422
          %v469 = vmul.f32 %v422, %v468
          %vm470 = vcmp.eq.f32.partialorder %v422, inf
          %v471 = vsel %vm470, %v422, %v469
          %vm472 = vcmp.eq.f32.partialorder %v422, 0.0
          %v473 = vand.u32 %v422, 2147483648
          %v474 = vsel %vm472, %v473, %v471
          %v475 = vrsqrt.pop %v425
          %v476 = vmul.f32 %v425, %v475
          %vm477 = vcmp.eq.f32.partialorder %v425, inf
          %v478 = vsel %vm477, %v425, %v476
          %vm479 = vcmp.eq.f32.partialorder %v425, 0.0
          %v480 = vand.u32 %v425, 2147483648
          %v481 = vsel %vm479, %v480, %v478
          %v482 = vmax.f32 %v432, 1e-12
          %v483 = vmax.f32 %v439, 1e-12
          %v484 = vmax.f32 %v446, 1e-12
          %v485 = vmax.f32 %v453, 1e-12
          %v486 = vmax.f32 %v460, 1e-12
          %v487 = vmax.f32 %v467, 1e-12
          %v488 = vmax.f32 %v474, 1e-12
          %v489 = vmax.f32 %v481, 1e-12
          %v490 = vrcp.pop %v482
          %v491 = vmul.f32 %v272, %v490
          %v492 = vrcp.pop %v483
          %v493 = vmul.f32 %v273, %v492
          %v494 = vrcp.pop %v484
          %v495 = vmul.f32 %v274, %v494
          %v496 = vrcp.pop %v485
          %v497 = vmul.f32 %v275, %v496
          %v498 = vrcp.pop %v486
          %v499 = vmul.f32 %v276, %v498
          %v500 = vrcp.pop %v487
          %v501 = vmul.f32 %v277, %v500
          %v502 = vrcp.pop %v488
          %v503 = vmul.f32 %v278, %v502
          %v504 = vrcp.pop %v489
          %v505 = vmul.f32 %v279, %v504
          %v507 = vsel %vm289, %v379, 0
          %v510 = vsel %vm289, %v381, 0
          %v513 = vsel %vm289, %v383, 0
          %v516 = vsel %vm289, %v385, 0
          %v519 = vsel %vm289, %v387, 0
          %v522 = vsel %vm289, %v389, 0
          %v525 = vsel %vm289, %v391, 0
          %v528 = vsel %vm289, %v393, 0
          %v531 = vsel %vm289, %v280, 0
          %533 = vmatprep.subr.mxu0 0.0
          %534 = vmatpush1.xpose.msra.mxu0 %v531
          %535 = vmatprep.subr.mxu0 0.0
          %536 = vmatpush1.xpose.msra.mxu0 0.0
          %537 = vmatprep.subr.mxu0 0.0
          %538 = vmatpush1.xpose.msra.mxu0 0.0
          %539 = vmatprep.subr.mxu0 0.0
          %540 = vmatpush1.xpose.msra.mxu0 0.0
          %541 = vmatprep.subr.mxu0 0.0
          %542 = vmatpush1.xpose.msra.mxu0 0.0
          %543 = vmatprep.subr.mxu0 0.0
          %544 = vmatpush1.xpose.msra.mxu0 0.0
          %545 = vmatprep.subr.mxu0 0.0
          %546 = vmatpush1.xpose.msra.mxu0 0.0
          %547 = vmatprep.subr.mxu0 0.0
          %548 = vmatpush1.xpose.msra.mxu0 0.0
          %549 = vmatprep.subr.mxu0 0.0
          %550 = vmatpush1.xpose.msra.mxu0 0.0
          %551 = vmatprep.subr.mxu0 0.0
          %552 = vmatpush1.xpose.msra.mxu0 0.0
          %553 = vmatprep.subr.mxu0 0.0
          %554 = vmatpush1.xpose.msra.mxu0 0.0
          %555 = vmatprep.subr.mxu0 0.0
          %556 = vmatpush1.xpose.msra.mxu0 0.0
          %557 = vmatprep.subr.mxu0 0.0
          %558 = vmatpush1.xpose.msra.mxu0 0.0
          %559 = vmatprep.subr.mxu0 0.0
          %560 = vmatpush1.xpose.msra.mxu0 0.0
          %561 = vmatprep.subr.mxu0 0.0
          %562 = vmatpush1.xpose.msra.mxu0 0.0
          %563 = vmatprep.subr.mxu0 0.0
          %564 = vmatpush1.xpose.msra.mxu0 0.0
          %565 = vmatprep.subr.mxu0 0.0
          %566 = vmatpush1.xpose.msra.mxu0 0.0
          %567 = vmatprep.subr.mxu0 0.0
          %568 = vmatpush1.xpose.msra.mxu0 0.0
          %569 = vmatprep.subr.mxu0 0.0
          %570 = vmatpush1.xpose.msra.mxu0 0.0
          %571 = vmatprep.subr.mxu0 0.0
          %572 = vmatpush1.xpose.msra.mxu0 0.0
          %573 = vmatprep.subr.mxu0 0.0
          %574 = vmatpush1.xpose.msra.mxu0 0.0
          %575 = vmatprep.subr.mxu0 0.0
          %576 = vmatpush1.xpose.msra.mxu0 0.0
          %577 = vmatprep.subr.mxu0 0.0
          %578 = vmatpush1.xpose.msra.mxu0 0.0
          %579 = vmatprep.subr.mxu0 0.0
          %580 = vmatpush1.xpose.msra.mxu0 0.0
          %581 = vmatprep.subr.mxu0 0.0
          %582 = vmatpush1.xpose.msra.mxu0 0.0
          %583 = vmatprep.subr.mxu0 0.0
          %584 = vmatpush1.xpose.msra.mxu0 0.0
          %585 = vmatprep.subr.mxu0 0.0
          %586 = vmatpush1.xpose.msra.mxu0 0.0
          %587 = vmatprep.subr.mxu0 0.0
          %588 = vmatpush1.xpose.msra.mxu0 0.0
          %589 = vmatprep.subr.mxu0 0.0
          %590 = vmatpush1.xpose.msra.mxu0 0.0
          %591 = vmatprep.subr.mxu0 0.0
          %592 = vmatpush1.xpose.msra.mxu0 0.0
          %593 = vmatprep.subr.mxu0 0.0
          %594 = vmatpush1.xpose.msra.mxu0 0.0
          %595 = vmatprep.subr.mxu0 0.0
          %596 = vmatpush1.xpose.msra.mxu0 0.0
          %597 = vmatprep.mubr.f32.mxu0 0.0
          %598 = vmatmul.mubr.f32.gmra.mrb[0].mxu0 %v507
          %v599 = vpop.f32.mrb[0].mxu0
          %v600 = vadd.f32 0.0, %v599
          %v601 = vpop.f32.mrb[0].mxu0
          %602 = vmatprep.mubr.f32.mxu0 0.0
          %603 = vmatmul.mubr.f32.gmra.mrb[0].mxu0 %v510
          %v604 = vpop.f32.mrb[0].mxu0
          %v605 = vadd.f32 0.0, %v604
          %v606 = vpop.f32.mrb[0].mxu0
          %607 = vmatprep.mubr.f32.mxu0 0.0
          %608 = vmatmul.mubr.f32.gmra.mrb[0].mxu0 %v513
          %v609 = vpop.f32.mrb[0].mxu0
          %v610 = vadd.f32 0.0, %v609
          %v611 = vpop.f32.mrb[0].mxu0
          %612 = vmatprep.mubr.f32.mxu0 0.0
          %613 = vmatmul.mubr.f32.gmra.mrb[0].mxu0 %v516
          %v614 = vpop.f32.mrb[0].mxu0
          %v615 = vadd.f32 0.0, %v614
          %v616 = vpop.f32.mrb[0].mxu0
          %617 = vmatprep.mubr.f32.mxu0 0.0
          %618 = vmatmul.mubr.f32.gmra.mrb[0].mxu0 %v519
          %v619 = vpop.f32.mrb[0].mxu0
          %v620 = vadd.f32 0.0, %v619
          %v621 = vpop.f32.mrb[0].mxu0
          %622 = vmatprep.mubr.f32.mxu0 0.0
          %623 = vmatmul.mubr.f32.gmra.mrb[0].mxu0 %v522
          %v624 = vpop.f32.mrb[0].mxu0
          %v625 = vadd.f32 0.0, %v624
          %v626 = vpop.f32.mrb[0].mxu0
          %627 = vmatprep.mubr.f32.mxu0 0.0
          %628 = vmatmul.mubr.f32.gmra.mrb[0].mxu0 %v525
          %v629 = vpop.f32.mrb[0].mxu0
          %v630 = vadd.f32 0.0, %v629
          %v631 = vpop.f32.mrb[0].mxu0
          %632 = vmatprep.mubr.f32.mxu0 0.0
          %633 = vmatmul.mubr.f32.gmra.mrb[0].mxu0 %v528
          %v634 = vpop.f32.mrb[0].mxu0
          %v635 = vadd.f32 0.0, %v634
          %v636 = vpop.f32.mrb[0].mxu0
          %637 = vdwg.mxu0
          %v639 = vsel %vm289, %v491, 0
          %v642 = vsel %vm289, %v493, 0
          %v645 = vsel %vm289, %v495, 0
          %v648 = vsel %vm289, %v497, 0
          %v651 = vsel %vm289, %v499, 0
          %v654 = vsel %vm289, %v501, 0
          %v657 = vsel %vm289, %v503, 0
          %v660 = vsel %vm289, %v505, 0
          %662 = vmatprep.subr.mxu0 0.0
          %663 = vmatpush1.xpose.msra.mxu0 %v639
          %664 = vmatprep.subr.mxu0 0.0
          %665 = vmatpush1.xpose.msra.mxu0 %v642
          %666 = vmatprep.subr.mxu0 0.0
          %667 = vmatpush1.xpose.msra.mxu0 %v645
          %668 = vmatprep.subr.mxu0 0.0
          %669 = vmatpush1.xpose.msra.mxu0 %v648
          %670 = vmatprep.subr.mxu0 0.0
          %671 = vmatpush1.xpose.msra.mxu0 %v651
          %672 = vmatprep.subr.mxu0 0.0
          %673 = vmatpush1.xpose.msra.mxu0 %v654
          %674 = vmatprep.subr.mxu0 0.0
          %675 = vmatpush1.xpose.msra.mxu0 %v657
          %676 = vmatprep.subr.mxu0 0.0
          %677 = vmatpush1.xpose.msra.mxu0 %v660
          %678 = vmatprep.subr.mxu0 0.0
          %679 = vmatpush1.xpose.msra.mxu0 0.0
          %680 = vmatprep.subr.mxu0 0.0
          %681 = vmatpush1.xpose.msra.mxu0 0.0
          %682 = vmatprep.subr.mxu0 0.0
          %683 = vmatpush1.xpose.msra.mxu0 0.0
          %684 = vmatprep.subr.mxu0 0.0
          %685 = vmatpush1.xpose.msra.mxu0 0.0
          %686 = vmatprep.subr.mxu0 0.0
          %687 = vmatpush1.xpose.msra.mxu0 0.0
          %688 = vmatprep.subr.mxu0 0.0
          %689 = vmatpush1.xpose.msra.mxu0 0.0
          %690 = vmatprep.subr.mxu0 0.0
          %691 = vmatpush1.xpose.msra.mxu0 0.0
          %692 = vmatprep.subr.mxu0 0.0
          %693 = vmatpush1.xpose.msra.mxu0 0.0
          %694 = vmatprep.subr.mxu0 0.0
          %695 = vmatpush1.xpose.msra.mxu0 0.0
          %696 = vmatprep.subr.mxu0 0.0
          %697 = vmatpush1.xpose.msra.mxu0 0.0
          %698 = vmatprep.subr.mxu0 0.0
          %699 = vmatpush1.xpose.msra.mxu0 0.0
          %700 = vmatprep.subr.mxu0 0.0
          %701 = vmatpush1.xpose.msra.mxu0 0.0
          %702 = vmatprep.subr.mxu0 0.0
          %703 = vmatpush1.xpose.msra.mxu0 0.0
          %704 = vmatprep.subr.mxu0 0.0
          %705 = vmatpush1.xpose.msra.mxu0 0.0
          %706 = vmatprep.subr.mxu0 0.0
          %707 = vmatpush1.xpose.msra.mxu0 0.0
          %708 = vmatprep.subr.mxu0 0.0
          %709 = vmatpush1.xpose.msra.mxu0 0.0
          %710 = vmatprep.subr.mxu0 0.0
          %711 = vmatpush1.xpose.msra.mxu0 0.0
          %712 = vmatprep.subr.mxu0 0.0
          %713 = vmatpush1.xpose.msra.mxu0 0.0
          %714 = vmatprep.subr.mxu0 0.0
          %715 = vmatpush1.xpose.msra.mxu0 0.0
          %716 = vmatprep.subr.mxu0 0.0
          %717 = vmatpush1.xpose.msra.mxu0 0.0
          %718 = vmatprep.subr.mxu0 0.0
          %719 = vmatpush1.xpose.msra.mxu0 0.0
          %720 = vmatprep.subr.mxu0 0.0
          %721 = vmatpush1.xpose.msra.mxu0 0.0
          %722 = vmatprep.subr.mxu0 0.0
          %723 = vmatpush1.xpose.msra.mxu0 0.0
          %724 = vmatprep.subr.mxu0 0.0
          %725 = vmatpush1.xpose.msra.mxu0 0.0
          %726 = vmatprep.mubr.f32.mxu0 0.0
          %727 = vmatmul.mubr.f32.gmra.mrb[0].mxu0 %v531
          %v728 = vpop.f32.mrb[0].mxu0
          %v729 = vadd.f32 0.0, %v728
          %v730 = vpop.f32.mrb[0].mxu0
          %731 = vdwg.mxu0
          loop: start=0, step=1, limit=15
          $region37: #{tpu_custom_call.1} parent=35 // loop_pre_header
            _
          $region38: #{tpu_custom_call.1} parent=35 // loop_header
            %s733 = sphi 0, %s737
            %p734 = scmp.ge.s32.totalorder %s733, 15
            %v738 = vphi %v600, %v776
            %v739 = vphi %v605, %v777
            %v740 = vphi %v610, %v778
            %v741 = vphi %v615, %v779
            %v742 = vphi %v620, %v780
            %v743 = vphi %v625, %v781
            %v744 = vphi %v630, %v782
            %v745 = vphi %v635, %v783
          $region39: #{tpu_custom_call.1} parent=35 // loop_header_branch
            %736 = sbr.rel (%p734) target = $region43
          $region40: #{tpu_custom_call.1} parent=35 // loop_body
            %vm746 = vcmask 31744
            %v747 = vsel %vm746, %v738, -inf
            %v748 = vsel %vm746, %v739, -inf
            %v749 = vsel %vm746, %v740, -inf
            %v750 = vsel %vm746, %v741, -inf
            %v751 = vsel %vm746, %v742, -inf
            %v752 = vmax.f32 %v747, %v751
            %v753 = vsel %vm746, %v743, -inf
            %v754 = vmax.f32 %v748, %v753
            %v755 = vsel %vm746, %v744, -inf
            %v756 = vmax.f32 %v749, %v755
            %v757 = vsel %vm746, %v745, -inf
            %v758 = vmax.f32 %v750, %v757
            %v759 = vmax.f32 %v752, %v754
            %v760 = vmax.f32 %v756, %v758
            %v761 = vmax.f32 %v759, %v760
            %v762 = vrot.slane %v761, 4
            %v763 = vmax.f32 %v761, %v762
            %v764 = vrot.slane %v763, 2
            %v765 = vmax.f32 %v763, %v764
            %v766 = vrot.slane %v765, 1
            %v767 = vmax.f32 %v765, %v766
            %vm768 = vcmp.ge.f32.partialorder %v738, %v767
            %vm769 = vcmp.ge.f32.partialorder %v739, %v767
            %vm770 = vcmp.ge.f32.partialorder %v740, %v767
            %vm771 = vcmp.ge.f32.partialorder %v741, %v767
            %vm772 = vcmp.ge.f32.partialorder %v742, %v767
            %vm773 = vcmp.ge.f32.partialorder %v743, %v767
            %vm774 = vcmp.ge.f32.partialorder %v744, %v767
            %vm775 = vcmp.ge.f32.partialorder %v745, %v767
            %v776 = vsel %vm768, -inf, %v738
            %v777 = vsel %vm769, -inf, %v739
            %v778 = vsel %vm770, -inf, %v740
            %v779 = vsel %vm771, -inf, %v741
            %v780 = vsel %vm772, -inf, %v742
            %v781 = vsel %vm773, -inf, %v743
            %v782 = vsel %vm774, -inf, %v744
            %v783 = vsel %vm775, -inf, %v745
          $region41: #{tpu_custom_call.1} parent=35 // loop_footer
            %s737 = sadd.s32 1, %s733
          $region42: #{tpu_custom_call.1} parent=35 // loop_footer_branch
            %732 = sbr.rel target = $region38
          $region43: #{tpu_custom_call.1} parent=35 // loop_exit
            _
          %vm784 = vcmask 31744
          %v785 = vsel %vm784, %v738, -inf
          %v786 = vsel %vm784, %v739, -inf
          %v787 = vsel %vm784, %v740, -inf
          %v788 = vsel %vm784, %v741, -inf
          %v789 = vsel %vm784, %v742, -inf
          %v790 = vmax.f32 %v785, %v789
          %v791 = vsel %vm784, %v743, -inf
          %v792 = vmax.f32 %v786, %v791
          %v793 = vsel %vm784, %v744, -inf
          %v794 = vmax.f32 %v787, %v793
          %v795 = vsel %vm784, %v745, -inf
          %v796 = vmax.f32 %v788, %v795
          %v797 = vmax.f32 %v790, %v792
          %v798 = vmax.f32 %v794, %v796
          %v799 = vmax.f32 %v797, %v798
          %v800 = vrot.slane %v799, 4
          %v801 = vmax.f32 %v799, %v800
          %v802 = vrot.slane %v801, 2
          %v803 = vmax.f32 %v801, %v802
          %v804 = vrot.slane %v803, 1
          %v805 = vmax.f32 %v803, %v804
          loop: start=0, step=1, limit=15
          $region44: #{tpu_custom_call.1} parent=35 // loop_pre_header
            _
          $region45: #{tpu_custom_call.1} parent=35 // loop_header
            %s807 = sphi 0, %s811
            %p808 = scmp.ge.s32.totalorder %s807, 15
            %v812 = vphi %v729, %v818
          $region46: #{tpu_custom_call.1} parent=35 // loop_header_branch
            %810 = sbr.rel (%p808) target = $region50
          $region47: #{tpu_custom_call.1} parent=35 // loop_body
            %vm813 = vcmask 519168
            %v814 = vsel %vm813, %v812, -inf
            %815 = vmax.xlane.f32.xlu0 %v814
            %v816 = vpop.xlane.xlu0 %815
            %vm817 = vcmp.ge.f32.partialorder %v812, %v816
            %v818 = vsel %vm817, -inf, %v812
          $region48: #{tpu_custom_call.1} parent=35 // loop_footer
            %s811 = sadd.s32 1, %s807
          $region49: #{tpu_custom_call.1} parent=35 // loop_footer_branch
            %806 = sbr.rel target = $region45
          $region50: #{tpu_custom_call.1} parent=35 // loop_exit
            _
          %vm819 = vcmask 519168
          %v820 = vsel %vm819, %v812, -inf
          %821 = vmax.xlane.f32.xlu0 %v820
          %v822 = vpop.xlane.xlu0 %821
          %vm823 = vcmp.ge.f32.partialorder %v600, %v805
          %vm824 = vcmp.ge.f32.partialorder %v605, %v805
          %vm825 = vcmp.ge.f32.partialorder %v610, %v805
          %vm826 = vcmp.ge.f32.partialorder %v615, %v805
          %vm827 = vcmp.ge.f32.partialorder %v620, %v805
          %vm828 = vcmp.ge.f32.partialorder %v625, %v805
          %vm829 = vcmp.ge.f32.partialorder %v630, %v805
          %vm830 = vcmp.ge.f32.partialorder %v635, %v805
          %vm831 = vcmp.ge.f32.partialorder %v729, %v822
          %v832 = vlaneseq
          %v833 = vand.u32 %v832, 127
          %v834 = vsel %vm823, %v833, 4
          %v835 = vsel %vm824, %v833, 4
          %v836 = vsel %vm825, %v833, 4
          %v837 = vsel %vm826, %v833, 4
          %v838 = vsel %vm827, %v833, 4
          %v839 = vsel %vm828, %v833, 4
          %v840 = vsel %vm829, %v833, 4
          %v841 = vsel %vm830, %v833, 4
          %v842 = vsel %vm784, %v834, 2147483647
          %v843 = vand.u32 %v842, 65535
          %v844 = vshra.s32 %v842, 16
          %v845 = vcvt.s32.f32 %v843
          %v846 = vcvt.s32.f32 %v844
          %847 = vmin.xlane.f32.xlu0 %v846
          %v848 = vpop.xlane.xlu0 %847
          %vm849 = vcmp.eq.f32.partialorder %v846, %v848
          %v850 = vsel %vm849, %v845, inf
          %851 = vmin.xlane.f32.xlu0 %v850
          %v852 = vpop.xlane.xlu0 %851
          %v853 = vcvt.f32.s32 %v852
          %v854 = vcvt.f32.s32 %v848
          %v855 = vshll.u32 %v854, 16
          %v856 = vadd.s32 %v855, %v853
          %v857 = vsel %vm784, %v835, 2147483647
          %v858 = vand.u32 %v857, 65535
          %v859 = vshra.s32 %v857, 16
          %v860 = vcvt.s32.f32 %v858
          %v861 = vcvt.s32.f32 %v859
          %862 = vmin.xlane.f32.xlu0 %v861
          %v863 = vpop.xlane.xlu0 %862
          %vm864 = vcmp.eq.f32.partialorder %v861, %v863
          %v865 = vsel %vm864, %v860, inf
          %866 = vmin.xlane.f32.xlu0 %v865
          %v867 = vpop.xlane.xlu0 %866
          %v868 = vcvt.f32.s32 %v867
          %v869 = vcvt.f32.s32 %v863
          %v870 = vshll.u32 %v869, 16
          %v871 = vadd.s32 %v870, %v868
          %v872 = vsel %vm784, %v836, 2147483647
          %v873 = vand.u32 %v872, 65535
          %v874 = vshra.s32 %v872, 16
          %v875 = vcvt.s32.f32 %v873
          %v876 = vcvt.s32.f32 %v874
          %877 = vmin.xlane.f32.xlu0 %v876
          %v878 = vpop.xlane.xlu0 %877
          %vm879 = vcmp.eq.f32.partialorder %v876, %v878
          %v880 = vsel %vm879, %v875, inf
          %881 = vmin.xlane.f32.xlu0 %v880
          %v882 = vpop.xlane.xlu0 %881
          %v883 = vcvt.f32.s32 %v882
          %v884 = vcvt.f32.s32 %v878
          %v885 = vshll.u32 %v884, 16
          %v886 = vadd.s32 %v885, %v883
          %v887 = vsel %vm784, %v837, 2147483647
          %v888 = vand.u32 %v887, 65535
          %v889 = vshra.s32 %v887, 16
          %v890 = vcvt.s32.f32 %v888
          %v891 = vcvt.s32.f32 %v889
          %892 = vmin.xlane.f32.xlu0 %v891
          %v893 = vpop.xlane.xlu0 %892
          %vm894 = vcmp.eq.f32.partialorder %v891, %v893
          %v895 = vsel %vm894, %v890, inf
          %896 = vmin.xlane.f32.xlu0 %v895
          %v897 = vpop.xlane.xlu0 %896
          %v898 = vcvt.f32.s32 %v897
          %v899 = vcvt.f32.s32 %v893
          %v900 = vshll.u32 %v899, 16
          %v901 = vadd.s32 %v900, %v898
          %v902 = vsel %vm784, %v838, 2147483647
          %v903 = vand.u32 %v902, 65535
          %v904 = vshra.s32 %v902, 16
          %v905 = vcvt.s32.f32 %v903
          %v906 = vcvt.s32.f32 %v904
          %907 = vmin.xlane.f32.xlu0 %v906
          %v908 = vpop.xlane.xlu0 %907
          %vm909 = vcmp.eq.f32.partialorder %v906, %v908
          %v910 = vsel %vm909, %v905, inf
          %911 = vmin.xlane.f32.xlu0 %v910
          %v912 = vpop.xlane.xlu0 %911
          %v913 = vcvt.f32.s32 %v912
          %v914 = vcvt.f32.s32 %v908
          %v915 = vshll.u32 %v914, 16
          %v916 = vadd.s32 %v915, %v913
          %v917 = vsel %vm784, %v839, 2147483647
          %v918 = vand.u32 %v917, 65535
          %v919 = vshra.s32 %v917, 16
          %v920 = vcvt.s32.f32 %v918
          %v921 = vcvt.s32.f32 %v919
          %922 = vmin.xlane.f32.xlu0 %v921
          %v923 = vpop.xlane.xlu0 %922
          %vm924 = vcmp.eq.f32.partialorder %v921, %v923
          %v925 = vsel %vm924, %v920, inf
          %926 = vmin.xlane.f32.xlu0 %v925
          %v927 = vpop.xlane.xlu0 %926
          %v928 = vcvt.f32.s32 %v927
          %v929 = vcvt.f32.s32 %v923
          %v930 = vshll.u32 %v929, 16
          %v931 = vadd.s32 %v930, %v928
          %v932 = vsel %vm784, %v840, 2147483647
          %v933 = vand.u32 %v932, 65535
          %v934 = vshra.s32 %v932, 16
          %v935 = vcvt.s32.f32 %v933
          %v936 = vcvt.s32.f32 %v934
          %937 = vmin.xlane.f32.xlu0 %v936
          %v938 = vpop.xlane.xlu0 %937
          %vm939 = vcmp.eq.f32.partialorder %v936, %v938
          %v940 = vsel %vm939, %v935, inf
          %941 = vmin.xlane.f32.xlu0 %v940
          %v942 = vpop.xlane.xlu0 %941
          %v943 = vcvt.f32.s32 %v942
          %v944 = vcvt.f32.s32 %v938
          %v945 = vshll.u32 %v944, 16
          %v946 = vadd.s32 %v945, %v943
          %v947 = vsel %vm784, %v841, 2147483647
          %v948 = vand.u32 %v947, 65535
          %v949 = vshra.s32 %v947, 16
          %v950 = vcvt.s32.f32 %v948
          %v951 = vcvt.s32.f32 %v949
          %952 = vmin.xlane.f32.xlu0 %v951
          %v953 = vpop.xlane.xlu0 %952
          %vm954 = vcmp.eq.f32.partialorder %v951, %v953
          %v955 = vsel %vm954, %v950, inf
          %956 = vmin.xlane.f32.xlu0 %v955
          %v957 = vpop.xlane.xlu0 %956
          %v958 = vcvt.f32.s32 %v957
          %v959 = vcvt.f32.s32 %v953
          %v960 = vshll.u32 %v959, 16
          %v961 = vadd.s32 %v960, %v958
          %vm962 = vcmask 7168
          %963 = vst.msk [vmem:[#allocation2] sm:$0xff] %vm962, %v856
          %964 = vst.msk [vmem:[#allocation2 + $0x8] sm:$0xff] %vm962, %v871
          %965 = vst.msk [vmem:[#allocation2 + $0x10] sm:$0xff] %vm962, %v886
          %966 = vst.msk [vmem:[#allocation2 + $0x18] sm:$0xff] %vm962, %v901
          %967 = vst.msk [vmem:[#allocation2 + $0x20] sm:$0xff] %vm962, %v916
          %968 = vst.msk [vmem:[#allocation2 + $0x28] sm:$0xff] %vm962, %v931
          %969 = vst.msk [vmem:[#allocation2 + $0x30] sm:$0xff] %vm962, %v946
          %970 = vst.msk [vmem:[#allocation2 + $0x38] sm:$0xff] %vm962, %v961
          %v971 = vlaneseq
          %v972 = vshrl.u32 %v971, 7
          %v973 = vsel %vm831, %v972, 4
          %v974 = vsel %vm819, %v973, 2147483647
          %v975 = vrot.slane %v974, 4
          %vm976 = vcmp.lt.s32.totalorder %v974, %v975
          %v977 = vsel %vm976, %v974, %v975
          %v978 = vrot.slane %v977, 2
          %vm979 = vcmp.lt.s32.totalorder %v977, %v978
          %v980 = vsel %vm979, %v977, %v978
          %v981 = vrot.slane %v980, 1
          %vm982 = vcmp.lt.s32.totalorder %v980, %v981
          %v983 = vsel %vm982, %v980, %v981
          %vm984 = vcmask 516096
          %985 = vst.msk [vmem:[#allocation3] sm:$0x1] %vm984, %v983
        $region36: #{tpu_custom_call.1} parent=31 // pred_fallthru
          _
        %s986 = smul.u32 %s24, 64
        %s987 = scalar_lea.vmem [#allocation2], %s986
        %v988 = vld [vmem:[%s987] sm:$0xff]
        %v989 = vld [vmem:[%s987 + $0x8] sm:$0xff]
        %v990 = vld [vmem:[%s987 + $0x10] sm:$0xff]
        %v991 = vld [vmem:[%s987 + $0x18] sm:$0xff]
        %v992 = vld [vmem:[%s987 + $0x20] sm:$0xff]
        %v993 = vld [vmem:[%s987 + $0x28] sm:$0xff]
        %v994 = vld [vmem:[%s987 + $0x30] sm:$0xff]
        %v995 = vld [vmem:[%s987 + $0x38] sm:$0xff]
        %v996 = vld [vmem:[#allocation3] sm:$0x1]
        %997 = vset.pattern.permute.xlu0 0
        %998 = vperm.xlu0 %997, %v988
        %v999 = vpop.permute.xlu0 %998
        %1000 = vset.pattern.permute.xlu0 0
        %1001 = vperm.xlu0 %1000, %v989
        %v1002 = vpop.permute.xlu0 %1001
        %1003 = vset.pattern.permute.xlu0 0
        %1004 = vperm.xlu0 %1003, %v990
        %v1005 = vpop.permute.xlu0 %1004
        %1006 = vset.pattern.permute.xlu0 0
        %1007 = vperm.xlu0 %1006, %v991
        %v1008 = vpop.permute.xlu0 %1007
        %1009 = vset.pattern.permute.xlu0 0
        %1010 = vperm.xlu0 %1009, %v992
        %v1011 = vpop.permute.xlu0 %1010
        %1012 = vset.pattern.permute.xlu0 0
        %1013 = vperm.xlu0 %1012, %v993
        %v1014 = vpop.permute.xlu0 %1013
        %1015 = vset.pattern.permute.xlu0 0
        %1016 = vperm.xlu0 %1015, %v994
        %v1017 = vpop.permute.xlu0 %1016
        %1018 = vset.pattern.permute.xlu0 0
        %1019 = vperm.xlu0 %1018, %v995
        %v1020 = vpop.permute.xlu0 %1019
        %v1021 = vlaneseq
        %v1022 = vshrl.u32 %v1021, 7
        %v1023 = vsub.s32 0, %v1022
        %v1024 = vrot.slane %v996, %v1023
        %vm1025 = vcmp.eq.s32.totalorder %v999, %v1024
        %vm1026 = vcmp.eq.s32.totalorder %v1002, %v1024
        %vm1027 = vcmp.eq.s32.totalorder %v1005, %v1024
        %vm1028 = vcmp.eq.s32.totalorder %v1008, %v1024
        %vm1029 = vcmp.eq.s32.totalorder %v1011, %v1024
        %vm1030 = vcmp.eq.s32.totalorder %v1014, %v1024
        %vm1031 = vcmp.eq.s32.totalorder %v1017, %v1024
        %vm1032 = vcmp.eq.s32.totalorder %v1020, %v1024
        %vm1033 = vcmp.ne.s32.totalorder %v988, 4
        %vm1034 = vcmp.ne.s32.totalorder %v989, 4
        %vm1035 = vcmp.ne.s32.totalorder %v990, 4
        %vm1036 = vcmp.ne.s32.totalorder %v991, 4
        %vm1037 = vcmp.ne.s32.totalorder %v992, 4
        %vm1038 = vcmp.ne.s32.totalorder %v993, 4
        %vm1039 = vcmp.ne.s32.totalorder %v994, 4
        %vm1040 = vcmp.ne.s32.totalorder %v995, 4
        %v1041 = vsel %vm1033, 1, 0
        %v1042 = vsel %vm1034, 1, 0
        %v1043 = vsel %vm1035, 1, 0
        %v1044 = vsel %vm1036, 1, 0
        %v1045 = vsel %vm1037, 1, 0
        %v1046 = vsel %vm1038, 1, 0
        %v1047 = vsel %vm1039, 1, 0
        %v1048 = vsel %vm1040, 1, 0
        %1049 = vset.pattern.permute.xlu0 0
        %1050 = vperm.xlu0 %1049, %v1041
        %v1051 = vpop.permute.xlu0 %1050
        %1052 = vset.pattern.permute.xlu0 0
        %1053 = vperm.xlu0 %1052, %v1042
        %v1054 = vpop.permute.xlu0 %1053
        %1055 = vset.pattern.permute.xlu0 0
        %1056 = vperm.xlu0 %1055, %v1043
        %v1057 = vpop.permute.xlu0 %1056
        %1058 = vset.pattern.permute.xlu0 0
        %1059 = vperm.xlu0 %1058, %v1044
        %v1060 = vpop.permute.xlu0 %1059
        %1061 = vset.pattern.permute.xlu0 0
        %1062 = vperm.xlu0 %1061, %v1045
        %v1063 = vpop.permute.xlu0 %1062
        %1064 = vset.pattern.permute.xlu0 0
        %1065 = vperm.xlu0 %1064, %v1046
        %v1066 = vpop.permute.xlu0 %1065
        %1067 = vset.pattern.permute.xlu0 0
        %1068 = vperm.xlu0 %1067, %v1047
        %v1069 = vpop.permute.xlu0 %1068
        %1070 = vset.pattern.permute.xlu0 0
        %1071 = vperm.xlu0 %1070, %v1048
        %v1072 = vpop.permute.xlu0 %1071
        %vm1073 = vcmp.eq.s32.totalorder %v1051, 1
        %vm1074 = vcmp.eq.s32.totalorder %v1054, 1
        %vm1075 = vcmp.eq.s32.totalorder %v1057, 1
        %vm1076 = vcmp.eq.s32.totalorder %v1060, 1
        %vm1077 = vcmp.eq.s32.totalorder %v1063, 1
        %vm1078 = vcmp.eq.s32.totalorder %v1066, 1
        %vm1079 = vcmp.eq.s32.totalorder %v1069, 1
        %vm1080 = vcmp.eq.s32.totalorder %v1072, 1
        %vm1081 = vmand %vm1025, %vm1073
        %vm1082 = vmand %vm1026, %vm1074
        %vm1083 = vmand %vm1027, %vm1075
        %vm1084 = vmand %vm1028, %vm1076
        %vm1085 = vmand %vm1029, %vm1077
        %vm1086 = vmand %vm1030, %vm1078
        %vm1087 = vmand %vm1031, %vm1079
        %vm1088 = vmand %vm1032, %vm1080
        %vm1089 = vcmp.ne.s32.totalorder %v996, 4
        %v1090 = vsel %vm1089, 1, 0
        %v1091 = vlaneseq
        %v1092 = vshrl.u32 %v1091, 7
        %v1093 = vsub.s32 0, %v1092
        %v1094 = vrot.slane %v1090, %v1093
        %vm1095 = vcmp.eq.s32.totalorder %v1094, 1
        %vm1096 = vmand %vm1081, %vm1095
        %vm1097 = vmand %vm1082, %vm1095
        %vm1098 = vmand %vm1083, %vm1095
        %vm1099 = vmand %vm1084, %vm1095
        %vm1100 = vmand %vm1085, %vm1095
        %vm1101 = vmand %vm1086, %vm1095
        %vm1102 = vmand %vm1087, %vm1095
        %vm1103 = vmand %vm1088, %vm1095
        %vm1104 = vmpackc.low %vm1097, %vm1096
        %vm1105 = vmpackc.low %vm1099, %vm1098
        %vm1106 = vmpackc.even %vm1105, %vm1104
        %vm1107 = vmpackc.low %vm1101, %vm1100
        %vm1108 = vmpackc.low %vm1103, %vm1102
        %vm1109 = vmpackc.even %vm1108, %vm1107
        %v1110 = vsel %vm1106, 16843009, 0
        %v1111 = vsel %vm1109, 16843009, 0
        %vm1112 = vcmask 523264
        %1113 = vst.msk [vmem:[%s234] sm:$0xff] %vm1112, %v1110
        %1114 = vst.msk [vmem:[%s234 + $0x8] sm:$0xff] %vm1112, %v1111
        %s1115 = sand.u32 %s130, 1
        %s1116 = scalar_lea.sflag [#allocation5], %s1115
        %s1117 = sand.u32 %s130, 1
        %s1118 = smul.addr %s1117, 16
        %s1119 = scalar_lea.vmem [#allocation4], %s1118
        // Predicated region
        $region51: #{tpu_custom_call.1} parent=31 // pred_check
          %p1120 = pneg %p140
        $region52: #{tpu_custom_call.1} parent=31 // pred_check_branch
          %1122 = sbr.rel (%p1120) target = $region54
        $region53: #{tpu_custom_call.1} parent=31 // pred_region
          %s1123 = smul.u32 2, %s24
          %s1125 = ssub.s32 256, 256
          %1126 = vsyncadd %s1116, %s1125
          %s1127 = smul.addr %s23, 2
          %s1128 = sadd.s32 %s1123, %s1127
          %s1129 = smul.addr %s22, 4
          %s1130 = sadd.s32 %s1128, %s1129
          %s1131 = smul.addr %s1130, 128
          %s1132 = scalar_lea.hbm %s3, %s1131
          %s1133 = sshll.u32 %s1119, 4
          %s1134 = int_to_ptr.vmem [resolvable:$true] %s1133
          %1139 = dma.vmem_to_hbm [thread:$0]  %s1134, 256, %s1132, %s1116, 128, 128, 8
        $region54: #{tpu_custom_call.1} parent=31 // pred_fallthru
          _
      $region32: #{tpu_custom_call.1} parent=5 // pred_fallthru
        _
      %p1140 = scmp.le.s32.totalorder 2, %s12
      // Predicated region
      $region55: #{tpu_custom_call.1} parent=5 // pred_check
        %p1141 = pneg %p1140
      $region56: #{tpu_custom_call.1} parent=5 // pred_check_branch
        %1143 = sbr.rel (%p1141) target = $region58
      $region57: #{tpu_custom_call.1} parent=5 // pred_region
        %s1144 = ssub.s32 %s12, 2
        // Predicated region
        $region59: #{tpu_custom_call.1} parent=57 // pred_check
          %p1145 = pneg %p146
        $region60: #{tpu_custom_call.1} parent=57 // pred_check_branch
          %1147 = sbr.rel (%p1145) target = $region62
        $region61: #{tpu_custom_call.1} parent=57 // pred_region
          %s1148 = sand.u32 %s131, 1
          %s1149 = scalar_lea.sflag [#allocation5], %s1148
          %s1150 = sand.u32 %s131, 1
          %s1151 = smul.addr %s1150, 16
          %s1152 = scalar_lea.vmem [#allocation4], %s1151
          %1153 = dma.done %s1149, 256
        $region62: #{tpu_custom_call.1} parent=57 // pred_fallthru
          _
      $region58: #{tpu_custom_call.1} parent=5 // pred_fallthru
        _
    $region6: #{tpu_custom_call.1} parent=1 // loop_footer
      %s16 = sadd.s32 1, %s12
    $region7: #{tpu_custom_call.1} parent=1 // loop_footer_branch
      %11 = sbr.rel target = $region3
    $region8: #{tpu_custom_call.1} parent=1 // loop_exit
      _
    %1154 = vsyncpa [#allocation5], 1
    %s1155 = scalar_lea.sflag [#allocation5], 1
    %1156 = vsyncpa %s1155, 1

</llo_original>
